<compile_context>
chip_gen: v7x
topology: tpu7x:2x2x1
jax: 0.10.0
libtpu: 0.0.40
codegen_flags: <defaults>
</compile_context>

<pallas_src>
import functools

import jax
import jax.numpy as jnp
from jax.experimental import pallas as pl
from jax.experimental.pallas import tpu as pltpu


def _precompute_kernel(ne_ref, te_ref, g_ref, b_ref, wp_ref, bp_ref, x_ref,
                       ax_ref, wflat_ref, bias_ref, *, eps):
    """Batch-invariant work + fused graph propagation, executed once."""
    # ---- node_embeddings = LayerNorm(node_emb + time_emb); dropout = identity
    ne = ne_ref[...] + te_ref[...]                       # [N, D]  (te is [1, D])
    mean = jnp.mean(ne, axis=-1, keepdims=True)
    var = jnp.mean((ne - mean) ** 2, axis=-1, keepdims=True)
    ne = (ne - mean) * jax.lax.rsqrt(var + eps)          # EUP rsqrt
    ne = ne * g_ref[...] + b_ref[...]                    # [N, D]

    # ---- adjacency: softmax(ne @ ne.T, dim=1)
    logits = jnp.dot(ne, ne.T, preferred_element_type=jnp.float32)   # [N, N]
    logits = logits - jnp.max(logits, axis=1, keepdims=True)
    e = jnp.exp(logits)
    adj = e * pl.reciprocal(jnp.sum(e, axis=1, keepdims=True))       # [N, N]

    # ---- graph propagation for the WHOLE batch in one matmul.
    # x_ref is [N, B*C] (batch fused on lanes); ax[n, b*C+i] = (adj @ x_b)[n,i]
    ax_ref[...] = jnp.dot(adj, x_ref[...],
                          preferred_element_type=jnp.float32).astype(ax_ref.dtype)

    # ---- per-node weights & bias from the pools (computed once)
    # wflat[n, (k*C+i)*O + o] == einsum('nd,dkio->nkio')[n,k,i,o]
    wflat_ref[...] = jnp.dot(ne, wp_ref[...],
                             preferred_element_type=jnp.float32
                             ).astype(wflat_ref.dtype)   # [N, 2*C*O]
    bias_ref[...] = jnp.dot(ne, bp_ref[...],
                            preferred_element_type=jnp.float32
                            ).astype(bias_ref.dtype)     # [N, O]


def _gconv_kernel(xg_ref, w3_ref, bias_ref, out_ref):
    """Per-node contraction, vectorized over batch and channels.

    xg: [N, B, 2C], w3: [N, 2C, O], bias: [N, 1, O] -> out: [N, B, O]
    """
    out = jnp.einsum('nbk,nko->nbo', xg_ref[...], w3_ref[...],
                     preferred_element_type=jnp.float32)
    out_ref[...] = (out + bias_ref[...]).astype(out_ref.dtype)


def gcn_forward(x, node_emb, time_emb, weights_pool, bias_pool, gamma, beta,
                eps=1e-12):
    """x: [B,N,C]; node_emb: [N,D]; time_emb: [D]; weights_pool: [D,2,C,O];
    bias_pool: [D,O]; gamma/beta: [D].  Returns [B,N,O]."""
    B, N, C = x.shape
    D = node_emb.shape[1]
    O = bias_pool.shape[1]
    dt = x.dtype

    # ---- layout glue (plain JAX, outside the kernels)
    wp_flat = weights_pool.reshape(D, 2 * C * O)   # (k, i, o) row-major
    x_nbc = jnp.transpose(x, (1, 0, 2))            # [N, B, C]
    x_flat = x_nbc.reshape(N, B * C)               # batch fused onto lanes
    te2 = time_emb.reshape(1, D)
    g2 = gamma.reshape(1, D)
    b2 = beta.reshape(1, D)

    # ---- kernel 1: one-shot precompute + fused adj @ X
    ax_flat, wflat, bias = pl.pallas_call(
        functools.partial(_precompute_kernel, eps=eps),
        out_shape=(jax.ShapeDtypeStruct((N, B * C), dt),        # adj @ X
                   jax.ShapeDtypeStruct((N, 2 * C * O), dt),     # per-node W
                   jax.ShapeDtypeStruct((N, O), dt)),            # per-node bias
        grid_spec=pltpu.PrefetchScalarGridSpec(
            num_scalar_prefetch=0,
            grid=(1,),
            in_specs=[
                pl.BlockSpec((N, D), lambda i: (0, 0)),              # node_emb
                pl.BlockSpec((1, D), lambda i: (0, 0)),              # time_emb
                pl.BlockSpec((1, D), lambda i: (0, 0)),              # ln gamma
                pl.BlockSpec((1, D), lambda i: (0, 0)),              # ln beta
                pl.BlockSpec((D, 2 * C * O), lambda i: (0, 0)),      # weights_pool
                pl.BlockSpec((D, O), lambda i: (0, 0)),              # bias_pool
                pl.BlockSpec((N, B * C), lambda i: (0, 0)),          # x (lane-fused)
            ],
            out_specs=(pl.BlockSpec((N, B * C), lambda i: (0, 0)),
                       pl.BlockSpec((N, 2 * C * O), lambda i: (0, 0)),
                       pl.BlockSpec((N, O), lambda i: (0, 0)))),
        compiler_params=pltpu.CompilerParams(
            dimension_semantics=("arbitrary",)),
    )(node_emb, te2, g2, b2, wp_flat, bias_pool, x_flat)

    # ---- more layout glue: build [N, B, 2C] supports and [N, 2C, O] weights
    ax_nbc = ax_flat.reshape(N, B, C)
    xg = jnp.concatenate([x_nbc, ax_nbc], axis=2)   # k*C+i ordering along dim 2
    w3 = wflat.reshape(N, 2 * C, O)
    bias3 = bias.reshape(N, 1, O)

    # ---- kernel 2: one-shot vectorized per-node contraction
    out_nbo = pl.pallas_call(
        _gconv_kernel,
        out_shape=jax.ShapeDtypeStruct((N, B, O), dt),
        grid_spec=pltpu.PrefetchScalarGridSpec(
            num_scalar_prefetch=0,
            grid=(1,),
            in_specs=[
                pl.BlockSpec((N, B, 2 * C), lambda i: (0, 0, 0)),
                pl.BlockSpec((N, 2 * C, O), lambda i: (0, 0, 0)),
                pl.BlockSpec((N, 1, O), lambda i: (0, 0, 0)),
            ],
            out_specs=pl.BlockSpec((N, B, O), lambda i: (0, 0, 0))),
        compiler_params=pltpu.CompilerParams(
            dimension_semantics=("arbitrary",)),
    )(xg, w3, bias3)

    return jnp.transpose(out_nbo, (1, 0, 2))        # [B, N, O]


def gcn_reference(x, node_emb, time_emb, weights_pool, bias_pool, gamma, beta,
                  eps=1e-12):
    """Pure-JAX reference mirroring the PyTorch forward (eval mode)."""
    N = node_emb.shape[0]
    ne = node_emb + time_emb[None, :]
    mean = ne.mean(-1, keepdims=True)
    var = ((ne - mean) ** 2).mean(-1, keepdims=True)
    ne = (ne - mean) / jnp.sqrt(var + eps) * gamma + beta
    adj = jax.nn.softmax(ne @ ne.T, axis=1)
    supports = jnp.stack([jnp.eye(N, dtype=x.dtype), adj], axis=0)
    weights = jnp.einsum('nd,dkio->nkio', ne, weights_pool)
    bias = ne @ bias_pool
    x_g = jnp.einsum('knm,bmc->bknc', supports, x)
    x_g = jnp.transpose(x_g, (0, 2, 1, 3))
    return jnp.einsum('bnki,nkio->bno', x_g, weights) + bias[None]


if __name__ == "__main__":
    # Small, deterministic shapes: batch=2, node_num=16, dim_in=4, dim_out=8,
    # embed_dim=32.
    B, N, C, O, D = 2, 16, 4, 8, 32
    key = jax.random.PRNGKey(0)
    k = jax.random.split(key, 5)

    x = jax.random.normal(k[0], (B, N, C), dtype=jnp.float32)
    node_emb = jax.random.normal(k[1], (N, D), dtype=jnp.float32)
    time_emb = jax.random.normal(k[2], (D,), dtype=jnp.float32)
    weights_pool = 0.1 * jax.random.normal(k[3], (D, 2, C, O), dtype=jnp.float32)
    bias_pool = 0.1 * jax.random.normal(k[4], (D, O), dtype=jnp.float32)
    gamma = jnp.ones((D,), dtype=jnp.float32)   # nn.LayerNorm default init
    beta = jnp.zeros((D,), dtype=jnp.float32)

    out = gcn_forward(x, node_emb, time_emb, weights_pool, bias_pool,
                      gamma, beta)
    out = jax.block_until_ready(out)

    ref = gcn_reference(x, node_emb, time_emb, weights_pool, bias_pool,
                        gamma, beta)
    assert out.shape == (B, N, O)
    assert jnp.allclose(out, ref, atol=1e-4, rtol=1e-4), (
        f"max abs err = {jnp.max(jnp.abs(out - ref))}")

    print("KERNEL_OK")
</pallas_src>

<mosaic_0001>
module attributes {stable_mosaic.version = 11 : i64} {
  func.func @_precompute_kernel(%arg0: i32, %arg1: memref<16x32xf32, #tpu.memory_space<vmem>>, %arg2: memref<1x32xf32, #tpu.memory_space<vmem>>, %arg3: memref<1x32xf32, #tpu.memory_space<vmem>>, %arg4: memref<1x32xf32, #tpu.memory_space<vmem>>, %arg5: memref<32x64xf32, #tpu.memory_space<vmem>>, %arg6: memref<32x8xf32, #tpu.memory_space<vmem>>, %arg7: memref<16x8xf32, #tpu.memory_space<vmem>>, %arg8: memref<16x8xf32, #tpu.memory_space<vmem>>, %arg9: memref<16x64xf32, #tpu.memory_space<vmem>>, %arg10: memref<16x8xf32, #tpu.memory_space<vmem>>) attributes {dimension_semantics = [#tpu.dimension_semantics<arbitrary>], iteration_bounds = array<i64: 1>, scalar_prefetch = 0 : i64, scratch_operands = 0 : i64, tpu.core_type = #tpu.core_type<tc>, window_params = [{pipeline_mode = #tpu.pipeline_mode<synchronous>, transform_indices = @transform_0, window_bounds = array<i64: 16, 32>}, {pipeline_mode = #tpu.pipeline_mode<synchronous>, transform_indices = @transform_1, window_bounds = array<i64: 1, 32>}, {pipeline_mode = #tpu.pipeline_mode<synchronous>, transform_indices = @transform_2, window_bounds = array<i64: 1, 32>}, {pipeline_mode = #tpu.pipeline_mode<synchronous>, transform_indices = @transform_3, window_bounds = array<i64: 1, 32>}, {pipeline_mode = #tpu.pipeline_mode<synchronous>, transform_indices = @transform_4, window_bounds = array<i64: 32, 64>}, {pipeline_mode = #tpu.pipeline_mode<synchronous>, transform_indices = @transform_5, window_bounds = array<i64: 32, 8>}, {pipeline_mode = #tpu.pipeline_mode<synchronous>, transform_indices = @transform_6, window_bounds = array<i64: 16, 8>}, {pipeline_mode = #tpu.pipeline_mode<synchronous>, transform_indices = @transform_7, window_bounds = array<i64: 16, 8>}, {pipeline_mode = #tpu.pipeline_mode<synchronous>, transform_indices = @transform_8, window_bounds = array<i64: 16, 64>}, {pipeline_mode = #tpu.pipeline_mode<synchronous>, transform_indices = @transform_9, window_bounds = array<i64: 16, 8>}]} {
    %c0 = arith.constant 0 : index
    %c0_0 = arith.constant 0 : index
    %0 = vector.load %arg1[%c0, %c0_0] : memref<16x32xf32, #tpu.memory_space<vmem>>, vector<16x32xf32>
    %c0_1 = arith.constant 0 : index
    %c0_2 = arith.constant 0 : index
    %1 = vector.load %arg2[%c0_1, %c0_2] : memref<1x32xf32, #tpu.memory_space<vmem>>, vector<1x32xf32>
    %2 = vector.broadcast %1 : vector<1x32xf32> to vector<16x32xf32>
    %3 = arith.addf %0, %2 : vector<16x32xf32>
    %cst = arith.constant dense<0.000000e+00> : vector<16xf32>
    %4 = vector.multi_reduction <add>, %3, %cst [1] : vector<16x32xf32> to vector<16xf32>
    %5 = vector.shape_cast %4 : vector<16xf32> to vector<16x1xf32>
    %cst_3 = arith.constant 3.200000e+01 : f32
    %6 = vector.broadcast %cst_3 : f32 to vector<16x1xf32>
    %7 = arith.divf %5, %6 : vector<16x1xf32>
    %8 = vector.broadcast %7 : vector<16x1xf32> to vector<16x32xf32>
    %9 = arith.subf %3, %8 : vector<16x32xf32>
    %10 = arith.mulf %9, %9 : vector<16x32xf32>
    %cst_4 = arith.constant dense<0.000000e+00> : vector<16xf32>
    %11 = vector.multi_reduction <add>, %10, %cst_4 [1] : vector<16x32xf32> to vector<16xf32>
    %12 = vector.shape_cast %11 : vector<16xf32> to vector<16x1xf32>
    %cst_5 = arith.constant 3.200000e+01 : f32
    %13 = vector.broadcast %cst_5 : f32 to vector<16x1xf32>
    %14 = arith.divf %12, %13 : vector<16x1xf32>
    %15 = vector.broadcast %7 : vector<16x1xf32> to vector<16x32xf32>
    %16 = arith.subf %3, %15 : vector<16x32xf32>
    %cst_6 = arith.constant 9.99999996E-13 : f32
    %17 = vector.broadcast %cst_6 : f32 to vector<16x1xf32>
    %18 = arith.addf %14, %17 : vector<16x1xf32>
    %19 = math.rsqrt %18 : vector<16x1xf32>
    %20 = vector.broadcast %19 : vector<16x1xf32> to vector<16x32xf32>
    %21 = arith.mulf %16, %20 : vector<16x32xf32>
    %c0_7 = arith.constant 0 : index
    %c0_8 = arith.constant 0 : index
    %22 = vector.load %arg3[%c0_7, %c0_8] : memref<1x32xf32, #tpu.memory_space<vmem>>, vector<1x32xf32>
    %23 = vector.broadcast %22 : vector<1x32xf32> to vector<16x32xf32>
    %24 = arith.mulf %21, %23 : vector<16x32xf32>
    %c0_9 = arith.constant 0 : index
    %c0_10 = arith.constant 0 : index
    %25 = vector.load %arg4[%c0_9, %c0_10] : memref<1x32xf32, #tpu.memory_space<vmem>>, vector<1x32xf32>
    %26 = vector.broadcast %25 : vector<1x32xf32> to vector<16x32xf32>
    %27 = arith.addf %24, %26 : vector<16x32xf32>
    %28 = tpu.transpose %27, [1, 0] : vector<16x32xf32> -> vector<32x16xf32>
    %cst_11 = arith.constant dense<0.000000e+00> : vector<16x16xf32>
    %29 = tpu.matmul %27, %28, %cst_11 {dimension_numbers = #tpu.dot_dimension_numbers<[1], [0], [0], [1], [0, 0, 1, 1], [], []>} : vector<16x32xf32>, vector<32x16xf32>, vector<16x16xf32> -> vector<16x16xf32>
    %cst_12 = arith.constant dense<0xFF800000> : vector<16xf32>
    %30 = vector.multi_reduction <maximumf>, %29, %cst_12 [1] : vector<16x16xf32> to vector<16xf32>
    %31 = vector.shape_cast %30 : vector<16xf32> to vector<16x1xf32>
    %32 = vector.broadcast %31 : vector<16x1xf32> to vector<16x16xf32>
    %33 = arith.subf %29, %32 : vector<16x16xf32>
    %34 = math.exp %33 : vector<16x16xf32>
    %cst_13 = arith.constant dense<0.000000e+00> : vector<16xf32>
    %35 = vector.multi_reduction <add>, %34, %cst_13 [1] : vector<16x16xf32> to vector<16xf32>
    %36 = vector.shape_cast %35 : vector<16xf32> to vector<16x1xf32>
    %37 = tpu.reciprocal %36 : vector<16x1xf32> -> vector<16x1xf32>
    %38 = vector.broadcast %37 : vector<16x1xf32> to vector<16x16xf32>
    %39 = arith.mulf %34, %38 : vector<16x16xf32>
    %c0_14 = arith.constant 0 : index
    %c0_15 = arith.constant 0 : index
    %40 = vector.load %arg7[%c0_14, %c0_15] : memref<16x8xf32, #tpu.memory_space<vmem>>, vector<16x8xf32>
    %cst_16 = arith.constant dense<0.000000e+00> : vector<16x8xf32>
    %41 = tpu.matmul %39, %40, %cst_16 {dimension_numbers = #tpu.dot_dimension_numbers<[1], [0], [0], [1], [0, 0, 1, 1], [], []>} : vector<16x16xf32>, vector<16x8xf32>, vector<16x8xf32> -> vector<16x8xf32>
    %c0_17 = arith.constant 0 : index
    %c0_18 = arith.constant 0 : index
    %42 = vector.load %arg8[%c0_17, %c0_18] : memref<16x8xf32, #tpu.memory_space<vmem>>, vector<16x8xf32>
    tpu.vector_store %arg8[%c0_17, %c0_18], %41 {strides = array<i32>} : memref<16x8xf32, #tpu.memory_space<vmem>>, vector<16x8xf32>,
    %c0_19 = arith.constant 0 : index
    %c0_20 = arith.constant 0 : index
    %43 = vector.load %arg5[%c0_19, %c0_20] : memref<32x64xf32, #tpu.memory_space<vmem>>, vector<32x64xf32>
    %cst_21 = arith.constant dense<0.000000e+00> : vector<16x64xf32>
    %44 = tpu.matmul %27, %43, %cst_21 {dimension_numbers = #tpu.dot_dimension_numbers<[1], [0], [0], [1], [0, 0, 1, 1], [], []>} : vector<16x32xf32>, vector<32x64xf32>, vector<16x64xf32> -> vector<16x64xf32>
    %c0_22 = arith.constant 0 : index
    %c0_23 = arith.constant 0 : index
    %45 = vector.load %arg9[%c0_22, %c0_23] : memref<16x64xf32, #tpu.memory_space<vmem>>, vector<16x64xf32>
    tpu.vector_store %arg9[%c0_22, %c0_23], %44 {strides = array<i32>} : memref<16x64xf32, #tpu.memory_space<vmem>>, vector<16x64xf32>,
    %c0_24 = arith.constant 0 : index
    %c0_25 = arith.constant 0 : index
    %46 = vector.load %arg6[%c0_24, %c0_25] : memref<32x8xf32, #tpu.memory_space<vmem>>, vector<32x8xf32>
    %cst_26 = arith.constant dense<0.000000e+00> : vector<16x8xf32>
    %47 = tpu.matmul %27, %46, %cst_26 {dimension_numbers = #tpu.dot_dimension_numbers<[1], [0], [0], [1], [0, 0, 1, 1], [], []>} : vector<16x32xf32>, vector<32x8xf32>, vector<16x8xf32> -> vector<16x8xf32>
    %c0_27 = arith.constant 0 : index
    %c0_28 = arith.constant 0 : index
    %48 = vector.load %arg10[%c0_27, %c0_28] : memref<16x8xf32, #tpu.memory_space<vmem>>, vector<16x8xf32>
    tpu.vector_store %arg10[%c0_27, %c0_28], %47 {strides = array<i32>} : memref<16x8xf32, #tpu.memory_space<vmem>>, vector<16x8xf32>,
    return
  }
  func.func @transform_0(%arg0: i32) -> (i32, i32) {
    %c0_i32 = arith.constant 0 : i32
    %c0_i32_0 = arith.constant 0 : i32
    %c0_i32_1 = arith.constant 0 : i32
    return %c0_i32, %c0_i32_0 : i32, i32
  }
  func.func @transform_1(%arg0: i32) -> (i32, i32) {
    %c0_i32 = arith.constant 0 : i32
    %c0_i32_0 = arith.constant 0 : i32
    %c0_i32_1 = arith.constant 0 : i32
    return %c0_i32, %c0_i32_0 : i32, i32
  }
  func.func @transform_2(%arg0: i32) -> (i32, i32) {
    %c0_i32 = arith.constant 0 : i32
    %c0_i32_0 = arith.constant 0 : i32
    %c0_i32_1 = arith.constant 0 : i32
    return %c0_i32, %c0_i32_0 : i32, i32
  }
  func.func @transform_3(%arg0: i32) -> (i32, i32) {
    %c0_i32 = arith.constant 0 : i32
    %c0_i32_0 = arith.constant 0 : i32
    %c0_i32_1 = arith.constant 0 : i32
    return %c0_i32, %c0_i32_0 : i32, i32
  }
  func.func @transform_4(%arg0: i32) -> (i32, i32) {
    %c0_i32 = arith.constant 0 : i32
    %c0_i32_0 = arith.constant 0 : i32
    %c0_i32_1 = arith.constant 0 : i32
    return %c0_i32, %c0_i32_0 : i32, i32
  }
  func.func @transform_5(%arg0: i32) -> (i32, i32) {
    %c0_i32 = arith.constant 0 : i32
    %c0_i32_0 = arith.constant 0 : i32
    %c0_i32_1 = arith.constant 0 : i32
    return %c0_i32, %c0_i32_0 : i32, i32
  }
  func.func @transform_6(%arg0: i32) -> (i32, i32) {
    %c0_i32 = arith.constant 0 : i32
    %c0_i32_0 = arith.constant 0 : i32
    %c0_i32_1 = arith.constant 0 : i32
    return %c0_i32, %c0_i32_0 : i32, i32
  }
  func.func @transform_7(%arg0: i32) -> (i32, i32) {
    %c0_i32 = arith.constant 0 : i32
    %c0_i32_0 = arith.constant 0 : i32
    %c0_i32_1 = arith.constant 0 : i32
    return %c0_i32, %c0_i32_0 : i32, i32
  }
  func.func @transform_8(%arg0: i32) -> (i32, i32) {
    %c0_i32 = arith.constant 0 : i32
    %c0_i32_0 = arith.constant 0 : i32
    %c0_i32_1 = arith.constant 0 : i32
    return %c0_i32, %c0_i32_0 : i32, i32
  }
  func.func @transform_9(%arg0: i32) -> (i32, i32) {
    %c0_i32 = arith.constant 0 : i32
    %c0_i32_0 = arith.constant 0 : i32
    %c0_i32_1 = arith.constant 0 : i32
    return %c0_i32, %c0_i32_0 : i32, i32
  }
}

</mosaic_0001>

<llo_original>
// kernel: tpu_custom_call.1
$region0: #{tpu_custom_call.1}
  #allocation0 [shape = 'u32[]', space=smem, size = 0x4, offset = 0x4, fixed_abs, tag = 'smem constant byte address 0x4 - core index']
  #allocation1 [shape = 'u32[144,128]{1,0:T(1,128)}', space=vmem, size = 0x12000, scoped, tag = 'internal scratch']
  %s0 = inlined_call_operand.vmem [shape: f32[16,32], index: 0, kind: input, shape index: {}]
  %s1 = inlined_call_operand.vmem [shape: f32[1,32], index: 1, kind: input, shape index: {}]
  %s2 = inlined_call_operand.vmem [shape: f32[1,32], index: 2, kind: input, shape index: {}]
  %s3 = inlined_call_operand.vmem [shape: f32[1,32], index: 3, kind: input, shape index: {}]
  %s4 = inlined_call_operand.vmem [shape: f32[32,64], index: 4, kind: input, shape index: {}]
  %s5 = inlined_call_operand.vmem [shape: f32[32,8], index: 5, kind: input, shape index: {}]
  %s6 = inlined_call_operand.vmem [shape: f32[16,8], index: 6, kind: input, shape index: {}]
  %s7 = inlined_call_operand.vmem [shape: f32[16,8], index: 7, kind: output, shape index: {0}]
  %s8 = inlined_call_operand.hbm [shape: f32[16,64], index: 8, kind: output, shape index: {1}]
  %s9 = inlined_call_operand.vmem [shape: f32[16,8], index: 9, kind: output, shape index: {2}]
  %10 = xla_tuple %s7, %s8, %s9
  %s11 = sld [smem:[#allocation0]]
  $region54: #{tpu_custom_call.1} parent=0
    _
  %s13 = ssub.s32 1, %s11
  %s14 = scalar_select 0, %s13, %s11
  $region1: #{tpu_custom_call.1} parent=0
    #allocation2 [shape = 'u8[8192]{0}', space=vmem, size = 0x2000, scoped, tag = 'output window, operand 1, single buffered']
    #allocation3 [shape = 's32[1]{0}', space=sflag, size = 0x4, scoped, tag = 'scoped memory for tpu_custom_call.1']
    %15 = vsyncpa [#allocation3], 0
    // Predicated region
    $region2: #{tpu_custom_call.1} parent=1 // pred_check
      _
    $region3: #{tpu_custom_call.1} parent=1 // pred_check_branch
      %17 = sbr.rel (0) target = $region5
    $region4: #{tpu_custom_call.1} parent=1 // pred_region
      _
    $region5: #{tpu_custom_call.1} parent=1 // pred_fallthru
      _
    // Predicated region
    $region6: #{tpu_custom_call.1} parent=1 // pred_check
      _
    $region7: #{tpu_custom_call.1} parent=1 // pred_check_branch
      %19 = sbr.rel (0) target = $region9
    $region8: #{tpu_custom_call.1} parent=1 // pred_region
      _
    $region9: #{tpu_custom_call.1} parent=1 // pred_fallthru
      _
    // Predicated region
    $region10: #{tpu_custom_call.1} parent=1 // pred_check
      _
    $region11: #{tpu_custom_call.1} parent=1 // pred_check_branch
      %21 = sbr.rel (0) target = $region13
    $region12: #{tpu_custom_call.1} parent=1 // pred_region
      _
    $region13: #{tpu_custom_call.1} parent=1 // pred_fallthru
      _
    // Predicated region
    $region14: #{tpu_custom_call.1} parent=1 // pred_check
      _
    $region15: #{tpu_custom_call.1} parent=1 // pred_check_branch
      %23 = sbr.rel (0) target = $region17
    $region16: #{tpu_custom_call.1} parent=1 // pred_region
      _
    $region17: #{tpu_custom_call.1} parent=1 // pred_fallthru
      _
    // Predicated region
    $region18: #{tpu_custom_call.1} parent=1 // pred_check
      _
    $region19: #{tpu_custom_call.1} parent=1 // pred_check_branch
      %25 = sbr.rel (0) target = $region21
    $region20: #{tpu_custom_call.1} parent=1 // pred_region
      _
    $region21: #{tpu_custom_call.1} parent=1 // pred_fallthru
      _
    // Predicated region
    $region22: #{tpu_custom_call.1} parent=1 // pred_check
      _
    $region23: #{tpu_custom_call.1} parent=1 // pred_check_branch
      %27 = sbr.rel (0) target = $region25
    $region24: #{tpu_custom_call.1} parent=1 // pred_region
      _
    $region25: #{tpu_custom_call.1} parent=1 // pred_fallthru
      _
    // Predicated region
    $region26: #{tpu_custom_call.1} parent=1 // pred_check
      _
    $region27: #{tpu_custom_call.1} parent=1 // pred_check_branch
      %29 = sbr.rel (0) target = $region29
    $region28: #{tpu_custom_call.1} parent=1 // pred_region
      _
    $region29: #{tpu_custom_call.1} parent=1 // pred_fallthru
      _
    %v30 = vld [vmem:[%s0] sm:$0xff]
    %v31 = vld [vmem:[%s0 + $0x8] sm:$0xff]
    %v32 = vld [vmem:[%s1] sm:$0x1]
    %v34 = vlaneseq
    %v35 = vshrl.u32 %v34, 7
    %v36 = vsub.s32 0, %v35
    %v37 = vrot.slane %v32, %v36
    %v39 = vadd.f32 %v30, %v37
    %v40 = vadd.f32 %v31, %v37
    %vm41 = vcmask 261120
    %v42 = vsel %vm41, %v39, 0.0
    %43 = vadd.xlane.f32.xlu0 %v42
    %v44 = vpop.xlane.xlu0 %43
    %v45 = vsel %vm41, %v40, 0.0
    %46 = vadd.xlane.f32.xlu0 %v45
    %v47 = vpop.xlane.xlu0 %46
    %v48 = vrcp.pop 32.0
    %v49 = vmul.f32 %v44, %v48
    %v50 = vmul.f32 %v47, %v48
    %v51 = vsub.f32 %v39, %v49
    %v52 = vsub.f32 %v40, %v50
    %v53 = vmul.f32 %v51, %v51
    %v54 = vmul.f32 %v52, %v52
    %v55 = vsel %vm41, %v53, 0.0
    %56 = vadd.xlane.f32.xlu0 %v55
    %v57 = vpop.xlane.xlu0 %56
    %v58 = vsel %vm41, %v54, 0.0
    %59 = vadd.xlane.f32.xlu0 %v58
    %v60 = vpop.xlane.xlu0 %59
    %v61 = vmul.f32 %v57, %v48
    %v62 = vmul.f32 %v60, %v48
    %v63 = vadd.f32 %v61, 1e-12
    %v64 = vadd.f32 %v62, 1e-12
    %v65 = vrsqrt.pop %v63
    %v66 = vrsqrt.pop %v64
    %v67 = vmul.f32 %v51, %v65
    %v68 = vmul.f32 %v52, %v66
    %v69 = vld [vmem:[%s2] sm:$0x1]
    %v71 = vlaneseq
    %v72 = vshrl.u32 %v71, 7
    %v73 = vsub.s32 0, %v72
    %v74 = vrot.slane %v69, %v73
    %v76 = vmul.f32 %v67, %v74
    %v77 = vmul.f32 %v68, %v74
    %v78 = vld [vmem:[%s3] sm:$0x1]
    %v80 = vlaneseq
    %v81 = vshrl.u32 %v80, 7
    %v82 = vsub.s32 0, %v81
    %v83 = vrot.slane %v78, %v82
    %v85 = vadd.f32 %v76, %v83
    %v86 = vadd.f32 %v77, %v83
    %v88 = vsel %vm41, %v85, 0
    %v91 = vsel %vm41, %v86, 0
    %93 = vmatprep.subr.mxu0 0.0
    %94 = vmatpush1.xpose.msra.mxu0 %v88
    %95 = vmatprep.subr.mxu0 0.0
    %96 = vmatpush1.xpose.msra.mxu0 %v91
    %97 = vmatprep.subr.mxu0 0.0
    %98 = vmatpush1.xpose.msra.mxu0 0.0
    %99 = vmatprep.subr.mxu0 0.0
    %100 = vmatpush1.xpose.msra.mxu0 0.0
    %101 = vmatprep.subr.mxu0 0.0
    %102 = vmatpush1.xpose.msra.mxu0 0.0
    %103 = vmatprep.subr.mxu0 0.0
    %104 = vmatpush1.xpose.msra.mxu0 0.0
    %105 = vmatprep.subr.mxu0 0.0
    %106 = vmatpush1.xpose.msra.mxu0 0.0
    %107 = vmatprep.subr.mxu0 0.0
    %108 = vmatpush1.xpose.msra.mxu0 0.0
    %109 = vmatprep.subr.mxu0 0.0
    %110 = vmatpush1.xpose.msra.mxu0 0.0
    %111 = vmatprep.subr.mxu0 0.0
    %112 = vmatpush1.xpose.msra.mxu0 0.0
    %113 = vmatprep.subr.mxu0 0.0
    %114 = vmatpush1.xpose.msra.mxu0 0.0
    %115 = vmatprep.subr.mxu0 0.0
    %116 = vmatpush1.xpose.msra.mxu0 0.0
    %117 = vmatprep.subr.mxu0 0.0
    %118 = vmatpush1.xpose.msra.mxu0 0.0
    %119 = vmatprep.subr.mxu0 0.0
    %120 = vmatpush1.xpose.msra.mxu0 0.0
    %121 = vmatprep.subr.mxu0 0.0
    %122 = vmatpush1.xpose.msra.mxu0 0.0
    %123 = vmatprep.subr.mxu0 0.0
    %124 = vmatpush1.xpose.msra.mxu0 0.0
    %125 = vmatprep.subr.mxu0 0.0
    %126 = vmatpush1.xpose.msra.mxu0 0.0
    %127 = vmatprep.subr.mxu0 0.0
    %128 = vmatpush1.xpose.msra.mxu0 0.0
    %129 = vmatprep.subr.mxu0 0.0
    %130 = vmatpush1.xpose.msra.mxu0 0.0
    %131 = vmatprep.subr.mxu0 0.0
    %132 = vmatpush1.xpose.msra.mxu0 0.0
    %133 = vmatprep.subr.mxu0 0.0
    %134 = vmatpush1.xpose.msra.mxu0 0.0
    %135 = vmatprep.subr.mxu0 0.0
    %136 = vmatpush1.xpose.msra.mxu0 0.0
    %137 = vmatprep.subr.mxu0 0.0
    %138 = vmatpush1.xpose.msra.mxu0 0.0
    %139 = vmatprep.subr.mxu0 0.0
    %140 = vmatpush1.xpose.msra.mxu0 0.0
    %141 = vmatprep.subr.mxu0 0.0
    %142 = vmatpush1.xpose.msra.mxu0 0.0
    %143 = vmatprep.subr.mxu0 0.0
    %144 = vmatpush1.xpose.msra.mxu0 0.0
    %145 = vmatprep.subr.mxu0 0.0
    %146 = vmatpush1.xpose.msra.mxu0 0.0
    %147 = vmatprep.subr.mxu0 0.0
    %148 = vmatpush1.xpose.msra.mxu0 0.0
    %149 = vmatprep.subr.mxu0 0.0
    %150 = vmatpush1.xpose.msra.mxu0 0.0
    %151 = vmatprep.subr.mxu0 0.0
    %152 = vmatpush1.xpose.msra.mxu0 0.0
    %153 = vmatprep.subr.mxu0 0.0
    %154 = vmatpush1.xpose.msra.mxu0 0.0
    %155 = vmatprep.subr.mxu0 0.0
    %156 = vmatpush1.xpose.msra.mxu0 0.0
    %157 = vmatprep.mubr.f32.mxu0 0.0
    %158 = vmatmul.mubr.f32.gmra.mrb[0].mxu0 %v88
    %v159 = vpop.f32.mrb[0].mxu0
    %v160 = vadd.f32 0.0, %v159
    %v161 = vpop.f32.mrb[0].mxu0
    %162 = vmatprep.mubr.f32.mxu0 0.0
    %163 = vmatmul.mubr.f32.gmra.mrb[0].mxu0 %v91
    %v164 = vpop.f32.mrb[0].mxu0
    %v165 = vadd.f32 0.0, %v164
    %v166 = vpop.f32.mrb[0].mxu0
    %167 = vdwg.mxu0
    %vm168 = vcmask 130048
    %v169 = vsel %vm168, %v160, -inf
    %170 = vmax.xlane.f32.xlu0 %v169
    %v171 = vpop.xlane.xlu0 %170
    %v172 = vsel %vm168, %v165, -inf
    %173 = vmax.xlane.f32.xlu0 %v172
    %v174 = vpop.xlane.xlu0 %173
    %v175 = vsub.f32 %v160, %v171
    %v176 = vsub.f32 %v165, %v174
    %v177 = vmul.f32 %v175, 1.442695
    %v178 = vpow.pop %v177
    %v179 = vmul.f32 %v176, 1.442695
    %v180 = vpow.pop %v179
    %v181 = vsel %vm168, %v178, 0.0
    %182 = vadd.xlane.f32.xlu0 %v181
    %v183 = vpop.xlane.xlu0 %182
    %v184 = vsel %vm168, %v180, 0.0
    %185 = vadd.xlane.f32.xlu0 %v184
    %v186 = vpop.xlane.xlu0 %185
    %v187 = vrcp.pop %v183
    %v188 = vrcp.pop %v186
    %v189 = vmul.f32 %v178, %v187
    %v190 = vmul.f32 %v180, %v188
    %v191 = vld [vmem:[%s6] sm:$0xff]
    %v192 = vld [vmem:[%s6 + $0x8] sm:$0xff]
    %v194 = vsel %vm168, %v189, 0
    %v197 = vsel %vm168, %v190, 0
    %199 = vmatprep.subr.mxu0 0.0
    %200 = vmatpush1.msra.mxu0 %v191
    %201 = vmatprep.subr.mxu0 0.0
    %202 = vmatpush1.msra.mxu0 %v192
    %203 = vmatprep.subr.mxu0 0.0
    %204 = vmatpush1.msra.mxu0 0.0
    %205 = vmatprep.subr.mxu0 0.0
    %206 = vmatpush1.msra.mxu0 0.0
    %207 = vmatprep.subr.mxu0 0.0
    %208 = vmatpush1.msra.mxu0 0.0
    %209 = vmatprep.subr.mxu0 0.0
    %210 = vmatpush1.msra.mxu0 0.0
    %211 = vmatprep.subr.mxu0 0.0
    %212 = vmatpush1.msra.mxu0 0.0
    %213 = vmatprep.subr.mxu0 0.0
    %214 = vmatpush1.msra.mxu0 0.0
    %215 = vmatprep.subr.mxu0 0.0
    %216 = vmatpush1.msra.mxu0 0.0
    %217 = vmatprep.subr.mxu0 0.0
    %218 = vmatpush1.msra.mxu0 0.0
    %219 = vmatprep.subr.mxu0 0.0
    %220 = vmatpush1.msra.mxu0 0.0
    %221 = vmatprep.subr.mxu0 0.0
    %222 = vmatpush1.msra.mxu0 0.0
    %223 = vmatprep.subr.mxu0 0.0
    %224 = vmatpush1.msra.mxu0 0.0
    %225 = vmatprep.subr.mxu0 0.0
    %226 = vmatpush1.msra.mxu0 0.0
    %227 = vmatprep.subr.mxu0 0.0
    %228 = vmatpush1.msra.mxu0 0.0
    %229 = vmatprep.subr.mxu0 0.0
    %230 = vmatpush1.msra.mxu0 0.0
    %231 = vmatprep.subr.mxu0 0.0
    %232 = vmatpush1.msra.mxu0 0.0
    %233 = vmatprep.subr.mxu0 0.0
    %234 = vmatpush1.msra.mxu0 0.0
    %235 = vmatprep.subr.mxu0 0.0
    %236 = vmatpush1.msra.mxu0 0.0
    %237 = vmatprep.subr.mxu0 0.0
    %238 = vmatpush1.msra.mxu0 0.0
    %239 = vmatprep.subr.mxu0 0.0
    %240 = vmatpush1.msra.mxu0 0.0
    %241 = vmatprep.subr.mxu0 0.0
    %242 = vmatpush1.msra.mxu0 0.0
    %243 = vmatprep.subr.mxu0 0.0
    %244 = vmatpush1.msra.mxu0 0.0
    %245 = vmatprep.subr.mxu0 0.0
    %246 = vmatpush1.msra.mxu0 0.0
    %247 = vmatprep.subr.mxu0 0.0
    %248 = vmatpush1.msra.mxu0 0.0
    %249 = vmatprep.subr.mxu0 0.0
    %250 = vmatpush1.msra.mxu0 0.0
    %251 = vmatprep.subr.mxu0 0.0
    %252 = vmatpush1.msra.mxu0 0.0
    %253 = vmatprep.subr.mxu0 0.0
    %254 = vmatpush1.msra.mxu0 0.0
    %255 = vmatprep.subr.mxu0 0.0
    %256 = vmatpush1.msra.mxu0 0.0
    %257 = vmatprep.subr.mxu0 0.0
    %258 = vmatpush1.msra.mxu0 0.0
    %259 = vmatprep.subr.mxu0 0.0
    %260 = vmatpush1.msra.mxu0 0.0
    %261 = vmatprep.subr.mxu0 0.0
    %262 = vmatpush1.msra.mxu0 0.0
    %263 = vmatprep.mubr.f32.mxu0 0.0
    %264 = vmatmul.mubr.f32.gmra.mrb[0].mxu0 %v194
    %v265 = vpop.f32.mrb[0].mxu0
    %v266 = vadd.f32 0.0, %v265
    %v267 = vpop.f32.mrb[0].mxu0
    %268 = vmatprep.mubr.f32.mxu0 0.0
    %269 = vmatmul.mubr.f32.gmra.mrb[0].mxu0 %v197
    %v270 = vpop.f32.mrb[0].mxu0
    %v271 = vadd.f32 0.0, %v270
    %v272 = vpop.f32.mrb[0].mxu0
    %273 = vdwg.mxu0
    %vm274 = vcmask 64512
    %275 = vst.msk [vmem:[%s7] sm:$0xff] %vm274, %v266
    %276 = vst.msk [vmem:[%s7 + $0x8] sm:$0xff] %vm274, %v271
    %v277 = vld [vmem:[%s4] sm:$0xff]
    %v278 = vld [vmem:[%s4 + $0x8] sm:$0xff]
    %v279 = vld [vmem:[%s4 + $0x10] sm:$0xff]
    %v280 = vld [vmem:[%s4 + $0x18] sm:$0xff]
    %281 = vmatprep.subr.mxu0 0.0
    %282 = vmatpush1.msra.mxu0 %v277
    %283 = vmatprep.subr.mxu0 0.0
    %284 = vmatpush1.msra.mxu0 %v278
    %285 = vmatprep.subr.mxu0 0.0
    %286 = vmatpush1.msra.mxu0 %v279
    %287 = vmatprep.subr.mxu0 0.0
    %288 = vmatpush1.msra.mxu0 %v280
    %289 = vmatprep.subr.mxu0 0.0
    %290 = vmatpush1.msra.mxu0 0.0
    %291 = vmatprep.subr.mxu0 0.0
    %292 = vmatpush1.msra.mxu0 0.0
    %293 = vmatprep.subr.mxu0 0.0
    %294 = vmatpush1.msra.mxu0 0.0
    %295 = vmatprep.subr.mxu0 0.0
    %296 = vmatpush1.msra.mxu0 0.0
    %297 = vmatprep.subr.mxu0 0.0
    %298 = vmatpush1.msra.mxu0 0.0
    %299 = vmatprep.subr.mxu0 0.0
    %300 = vmatpush1.msra.mxu0 0.0
    %301 = vmatprep.subr.mxu0 0.0
    %302 = vmatpush1.msra.mxu0 0.0
    %303 = vmatprep.subr.mxu0 0.0
    %304 = vmatpush1.msra.mxu0 0.0
    %305 = vmatprep.subr.mxu0 0.0
    %306 = vmatpush1.msra.mxu0 0.0
    %307 = vmatprep.subr.mxu0 0.0
    %308 = vmatpush1.msra.mxu0 0.0
    %309 = vmatprep.subr.mxu0 0.0
    %310 = vmatpush1.msra.mxu0 0.0
    %311 = vmatprep.subr.mxu0 0.0
    %312 = vmatpush1.msra.mxu0 0.0
    %313 = vmatprep.subr.mxu0 0.0
    %314 = vmatpush1.msra.mxu0 0.0
    %315 = vmatprep.subr.mxu0 0.0
    %316 = vmatpush1.msra.mxu0 0.0
    %317 = vmatprep.subr.mxu0 0.0
    %318 = vmatpush1.msra.mxu0 0.0
    %319 = vmatprep.subr.mxu0 0.0
    %320 = vmatpush1.msra.mxu0 0.0
    %321 = vmatprep.subr.mxu0 0.0
    %322 = vmatpush1.msra.mxu0 0.0
    %323 = vmatprep.subr.mxu0 0.0
    %324 = vmatpush1.msra.mxu0 0.0
    %325 = vmatprep.subr.mxu0 0.0
    %326 = vmatpush1.msra.mxu0 0.0
    %327 = vmatprep.subr.mxu0 0.0
    %328 = vmatpush1.msra.mxu0 0.0
    %329 = vmatprep.subr.mxu0 0.0
    %330 = vmatpush1.msra.mxu0 0.0
    %331 = vmatprep.subr.mxu0 0.0
    %332 = vmatpush1.msra.mxu0 0.0
    %333 = vmatprep.subr.mxu0 0.0
    %334 = vmatpush1.msra.mxu0 0.0
    %335 = vmatprep.subr.mxu0 0.0
    %336 = vmatpush1.msra.mxu0 0.0
    %337 = vmatprep.subr.mxu0 0.0
    %338 = vmatpush1.msra.mxu0 0.0
    %339 = vmatprep.subr.mxu0 0.0
    %340 = vmatpush1.msra.mxu0 0.0
    %341 = vmatprep.subr.mxu0 0.0
    %342 = vmatpush1.msra.mxu0 0.0
    %343 = vmatprep.subr.mxu0 0.0
    %344 = vmatpush1.msra.mxu0 0.0
    %345 = vmatprep.mubr.f32.mxu0 0.0
    %346 = vmatmul.mubr.f32.gmra.mrb[0].mxu0 %v88
    %v347 = vpop.f32.mrb[0].mxu0
    %v348 = vadd.f32 0.0, %v347
    %v349 = vpop.f32.mrb[0].mxu0
    %350 = vmatprep.mubr.f32.mxu0 0.0
    %351 = vmatmul.mubr.f32.gmra.mrb[0].mxu0 %v91
    %v352 = vpop.f32.mrb[0].mxu0
    %v353 = vadd.f32 0.0, %v352
    %v354 = vpop.f32.mrb[0].mxu0
    %355 = vdwg.mxu0
    %vm356 = vcmask 523264
    %357 = vst.msk [vmem:[#allocation2] sm:$0xff] %vm356, %v348
    %358 = vst.msk [vmem:[#allocation2 + $0x8] sm:$0xff] %vm356, %v353
    %v359 = vld [vmem:[%s5] sm:$0xff]
    %v360 = vld [vmem:[%s5 + $0x8] sm:$0xff]
    %v361 = vld [vmem:[%s5 + $0x10] sm:$0xff]
    %v362 = vld [vmem:[%s5 + $0x18] sm:$0xff]
    %363 = vmatprep.subr.mxu0 0.0
    %364 = vmatpush1.msra.mxu0 %v359
    %365 = vmatprep.subr.mxu0 0.0
    %366 = vmatpush1.msra.mxu0 %v360
    %367 = vmatprep.subr.mxu0 0.0
    %368 = vmatpush1.msra.mxu0 %v361
    %369 = vmatprep.subr.mxu0 0.0
    %370 = vmatpush1.msra.mxu0 %v362
    %371 = vmatprep.subr.mxu0 0.0
    %372 = vmatpush1.msra.mxu0 0.0
    %373 = vmatprep.subr.mxu0 0.0
    %374 = vmatpush1.msra.mxu0 0.0
    %375 = vmatprep.subr.mxu0 0.0
    %376 = vmatpush1.msra.mxu0 0.0
    %377 = vmatprep.subr.mxu0 0.0
    %378 = vmatpush1.msra.mxu0 0.0
    %379 = vmatprep.subr.mxu0 0.0
    %380 = vmatpush1.msra.mxu0 0.0
    %381 = vmatprep.subr.mxu0 0.0
    %382 = vmatpush1.msra.mxu0 0.0
    %383 = vmatprep.subr.mxu0 0.0
    %384 = vmatpush1.msra.mxu0 0.0
    %385 = vmatprep.subr.mxu0 0.0
    %386 = vmatpush1.msra.mxu0 0.0
    %387 = vmatprep.subr.mxu0 0.0
    %388 = vmatpush1.msra.mxu0 0.0
    %389 = vmatprep.subr.mxu0 0.0
    %390 = vmatpush1.msra.mxu0 0.0
    %391 = vmatprep.subr.mxu0 0.0
    %392 = vmatpush1.msra.mxu0 0.0
    %393 = vmatprep.subr.mxu0 0.0
    %394 = vmatpush1.msra.mxu0 0.0
    %395 = vmatprep.subr.mxu0 0.0
    %396 = vmatpush1.msra.mxu0 0.0
    %397 = vmatprep.subr.mxu0 0.0
    %398 = vmatpush1.msra.mxu0 0.0
    %399 = vmatprep.subr.mxu0 0.0
    %400 = vmatpush1.msra.mxu0 0.0
    %401 = vmatprep.subr.mxu0 0.0
    %402 = vmatpush1.msra.mxu0 0.0
    %403 = vmatprep.subr.mxu0 0.0
    %404 = vmatpush1.msra.mxu0 0.0
    %405 = vmatprep.subr.mxu0 0.0
    %406 = vmatpush1.msra.mxu0 0.0
    %407 = vmatprep.subr.mxu0 0.0
    %408 = vmatpush1.msra.mxu0 0.0
    %409 = vmatprep.subr.mxu0 0.0
    %410 = vmatpush1.msra.mxu0 0.0
    %411 = vmatprep.subr.mxu0 0.0
    %412 = vmatpush1.msra.mxu0 0.0
    %413 = vmatprep.subr.mxu0 0.0
    %414 = vmatpush1.msra.mxu0 0.0
    %415 = vmatprep.subr.mxu0 0.0
    %416 = vmatpush1.msra.mxu0 0.0
    %417 = vmatprep.subr.mxu0 0.0
    %418 = vmatpush1.msra.mxu0 0.0
    %419 = vmatprep.subr.mxu0 0.0
    %420 = vmatpush1.msra.mxu0 0.0
    %421 = vmatprep.subr.mxu0 0.0
    %422 = vmatpush1.msra.mxu0 0.0
    %423 = vmatprep.subr.mxu0 0.0
    %424 = vmatpush1.msra.mxu0 0.0
    %425 = vmatprep.subr.mxu0 0.0
    %426 = vmatpush1.msra.mxu0 0.0
    %427 = vmatprep.mubr.f32.mxu0 0.0
    %428 = vmatmul.mubr.f32.gmra.mrb[0].mxu0 %v88
    %v429 = vpop.f32.mrb[0].mxu0
    %v430 = vadd.f32 0.0, %v429
    %v431 = vpop.f32.mrb[0].mxu0
    %432 = vmatprep.mubr.f32.mxu0 0.0
    %433 = vmatmul.mubr.f32.gmra.mrb[0].mxu0 %v91
    %v434 = vpop.f32.mrb[0].mxu0
    %v435 = vadd.f32 0.0, %v434
    %v436 = vpop.f32.mrb[0].mxu0
    %437 = vdwg.mxu0
    %438 = vst.msk [vmem:[%s9] sm:$0xff] %vm274, %v430
    %439 = vst.msk [vmem:[%s9 + $0x8] sm:$0xff] %vm274, %v435
    // Predicated region
    $region30: #{tpu_custom_call.1} parent=1 // pred_check
      _
    $region31: #{tpu_custom_call.1} parent=1 // pred_check_branch
      %441 = sbr.rel (0) target = $region33
    $region32: #{tpu_custom_call.1} parent=1 // pred_region
      _
    $region33: #{tpu_custom_call.1} parent=1 // pred_fallthru
      _
    // Predicated region
    $region34: #{tpu_custom_call.1} parent=1 // pred_check
      _
    $region35: #{tpu_custom_call.1} parent=1 // pred_check_branch
      %443 = sbr.rel (0) target = $region37
    $region36: #{tpu_custom_call.1} parent=1 // pred_region
      %s445 = ssub.s32 256, 256
      %446 = vsyncadd [#allocation3], %s445
      %s447 = sshll.u32 [#allocation2], 4
      %s448 = int_to_ptr.vmem [resolvable:$true] %s447
      %453 = dma.vmem_to_hbm [thread:$0]  %s448, 256, %s8, [#allocation3], 128, 128, 8
    $region37: #{tpu_custom_call.1} parent=1 // pred_fallthru
      _
    // Predicated region
    $region38: #{tpu_custom_call.1} parent=1 // pred_check
      _
    $region39: #{tpu_custom_call.1} parent=1 // pred_check_branch
      %455 = sbr.rel (0) target = $region41
    $region40: #{tpu_custom_call.1} parent=1 // pred_region
      _
    $region41: #{tpu_custom_call.1} parent=1 // pred_fallthru
      _
    // Predicated region
    $region42: #{tpu_custom_call.1} parent=1 // pred_check
      _
    $region43: #{tpu_custom_call.1} parent=1 // pred_check_branch
      %457 = sbr.rel (0) target = $region45
    $region44: #{tpu_custom_call.1} parent=1 // pred_region
      _
    $region45: #{tpu_custom_call.1} parent=1 // pred_fallthru
      _
    // Predicated region
    $region46: #{tpu_custom_call.1} parent=1 // pred_check
      _
    $region47: #{tpu_custom_call.1} parent=1 // pred_check_branch
      %459 = sbr.rel (0) target = $region49
    $region48: #{tpu_custom_call.1} parent=1 // pred_region
      %460 = dma.done [#allocation3], 256
    $region49: #{tpu_custom_call.1} parent=1 // pred_fallthru
      _
    // Predicated region
    $region50: #{tpu_custom_call.1} parent=1 // pred_check
      _
    $region51: #{tpu_custom_call.1} parent=1 // pred_check_branch
      %462 = sbr.rel (0) target = $region53
    $region52: #{tpu_custom_call.1} parent=1 // pred_region
      _
    $region53: #{tpu_custom_call.1} parent=1 // pred_fallthru
      _
    %463 = vsyncpa [#allocation3], 1

</llo_original>
